<compile_context>
chip_gen: v7x
topology: tpu7x:2x2x1
jax: 0.10.0
libtpu: 0.0.40
codegen_flags: <defaults>
</compile_context>

<pallas_src>
import functools

import jax
import jax.numpy as jnp
from jax.experimental import pallas as pl
from jax.experimental.pallas import tpu as pltpu


_SQRT_2_OVER_PI = 0.7978845608028654
_VMEM_PLAN_BUDGET = 48 * 1024 * 1024   # tile-planning budget (all generations)
_VMEM_LIMIT_BYTES = 56 * 1024 * 1024   # requested scoped VMEM (fits v7x 64 MiB)


def _activation(h, act_type):
    if act_type == "ReLU":
        return jnp.maximum(h, 0.0)
    # GeLU (tanh formulation, = torch.nn.functional.gelu(x, approximate='tanh')).
    # TODO(synk): PyTorch F.gelu default is the exact erf variant; the tanh
    # approximation is used for guaranteed Mosaic lowering (diff ~1e-3).
    return 0.5 * h * (1.0 + jnp.tanh(_SQRT_2_OVER_PI * (h + 0.044715 * h * h * h)))


def mlp_kernel(x_ref, w_in_ref, b_in_ref, w_out_ref, b_out_ref, o_ref, *, act_type):
    # x_ref     : (tn, d_model)     token rows (f32 or bf16)
    # w_in_ref  : (d_model, tm)     W_in^T tile
    # b_in_ref  : (1, tm)           f32
    # w_out_ref : (tm, d_model)     W_out^T tile
    # b_out_ref : (1, d_model)      f32
    # o_ref     : (tn, d_model)     f32 output rows; resident across the j axis,
    #                               used directly as the accumulator.
    j = pl.program_id(1)

    # h = x @ W_in_tile + b_in  -> (tn, tm); always accumulate / activate in f32.
    h = jnp.dot(x_ref[...], w_in_ref[...], preferred_element_type=jnp.float32)
    h = _activation(h + b_in_ref[...], act_type)

    # Partial second matmul: h @ W_out_tile -> (tn, d_model).
    h = h.astype(w_out_ref.dtype)   # no-op for f32; bf16 halves MXU LHS traffic
    partial = jnp.dot(h, w_out_ref[...], preferred_element_type=jnp.float32)

    @pl.when(j == 0)
    def _():
        o_ref[...] = partial + b_out_ref[...]

    @pl.when(j != 0)
    def _():
        o_ref[...] = o_ref[...] + partial


def _round_up(x, m):
    return ((x + m - 1) // m) * m


def _plan_tiles(n, d_model, d_mlp, itemsize, budget_bytes):
    """Pick (tn, tm, n_pad, m_pad). Prefers large tn; shrinks tm first."""
    n8 = _round_up(max(n, 1), 8)
    m128 = _round_up(d_mlp, 128)

    tn_cands = sorted(
        {c for c in (1024, 512, 256, 128, 64, 32, 16, 8) if c <= n8}
        | {min(n8, 1024)},
        reverse=True,
    )
    tm_cands = [c for c in (512, 256, 128) if m128 % c == 0] or [m128]

    def vmem_bytes(tn, tm):
        # double-buffered inputs + resident/double-buffered output + biases
        return ((2 * tn * d_model            # x tile
                 + 2 * d_model * tm          # W_in^T tile
                 + 2 * tm * d_model          # W_out^T tile
                 + 2 * (tm + d_model)        # biases
                 ) * itemsize
                + 2 * tn * d_model * 4)      # f32 output block

    for tn in tn_cands:
        for tm in tm_cands:
            if vmem_bytes(tn, tm) <= budget_bytes:
                return tn, tm, _round_up(n, tn), m128
    tn, tm = tn_cands[-1], tm_cands[-1]
    return tn, tm, _round_up(n, tn), m128


def mlp_forward(x, w_in, b_in, w_out, b_out, act_type, *, cast_to_bf16=False):
    """x: (batch, pos, d_model); weights in the PyTorch module's layouts."""
    assert act_type in ("ReLU", "GeLU")
    b, p, d_model = x.shape
    d_mlp = w_in.shape[0]
    n = b * p

    compute_dtype = jnp.bfloat16 if cast_to_bf16 else jnp.float32
    itemsize = 2 if cast_to_bf16 else 4

    tn, tm, n_pad, m_pad = _plan_tiles(n, d_model, d_mlp, itemsize,
                                       _VMEM_PLAN_BUDGET)

    # --- wrapper-side (one-time) layout work -------------------------------
    x2 = x.reshape(n, d_model)
    if n_pad != n:
        x2 = jnp.pad(x2, ((0, n_pad - n), (0, 0)))
    w_in_t = w_in.T                      # (d_model, d_mlp)
    w_out_t = w_out.T                    # (d_mlp, d_model)
    b_in_p = b_in
    if m_pad != d_mlp:
        w_in_t = jnp.pad(w_in_t, ((0, 0), (0, m_pad - d_mlp)))
        w_out_t = jnp.pad(w_out_t, ((0, m_pad - d_mlp), (0, 0)))
        b_in_p = jnp.pad(b_in, (0, m_pad - d_mlp))
    b_in2 = b_in_p.reshape(1, m_pad).astype(jnp.float32)
    b_out2 = b_out.reshape(1, d_model).astype(jnp.float32)

    x2 = x2.astype(compute_dtype)
    w_in_t = w_in_t.astype(compute_dtype)
    w_out_t = w_out_t.astype(compute_dtype)

    grid = (n_pad // tn, m_pad // tm)
    num_row_tiles = grid[0]

    # Advisory cost estimate: two matmuls; weights re-streamed once per row tile.
    flops = 4 * n_pad * m_pad * d_model
    transcendentals = n_pad * m_pad if act_type == "GeLU" else 0
    bytes_accessed = int(
        itemsize * n_pad * d_model                              # x read
        + 4 * n_pad * d_model                                   # out write
        + num_row_tiles * itemsize * 2 * d_model * m_pad        # W_in + W_out
        + num_row_tiles * 4 * m_pad + 4 * d_model)              # biases

    kernel = functools.partial(mlp_kernel, act_type=act_type)

    out = pl.pallas_call(
        kernel,
        out_shape=jax.ShapeDtypeStruct((n_pad, d_model), jnp.float32),
        grid_spec=pltpu.PrefetchScalarGridSpec(
            num_scalar_prefetch=0,
            grid=grid,
            in_specs=[
                pl.BlockSpec((tn, d_model), lambda i, j: (i, 0)),   # x rows
                pl.BlockSpec((d_model, tm), lambda i, j: (0, j)),   # W_in^T tile
                pl.BlockSpec((1, tm), lambda i, j: (0, j)),         # b_in tile
                pl.BlockSpec((tm, d_model), lambda i, j: (j, 0)),   # W_out^T tile
                pl.BlockSpec((1, d_model), lambda i, j: (0, 0)),    # b_out
            ],
            out_specs=pl.BlockSpec((tn, d_model), lambda i, j: (i, 0)),
        ),
        compiler_params=pltpu.CompilerParams(
            dimension_semantics=("parallel", "arbitrary"),
            vmem_limit_bytes=_VMEM_LIMIT_BYTES,
        ),
        cost_estimate=pl.CostEstimate(
            flops=flops,
            transcendentals=transcendentals,
            bytes_accessed=bytes_accessed,
        ),
    )(x2, w_in_t, b_in2, w_out_t, b_out2)

    return out[:n].reshape(b, p, d_model)


def mlp_reference(x, w_in, b_in, w_out, b_out, act_type):
    h = jnp.einsum("md,bpd->bpm", w_in, x) + b_in
    h = _activation(h, act_type)
    return jnp.einsum("dm,bpm->bpd", w_out, h) + b_out


def _run_case(key, batch, pos, d_model, d_mlp, act_type, cast_to_bf16, tol):
    k_x, k_win, k_wout, k_bin, k_bout = jax.random.split(key, 5)
    x = jax.random.normal(k_x, (batch, pos, d_model), jnp.float32)
    # torch-style init: randn / sqrt(d_model); biases small random to exercise adds.
    w_in = jax.random.normal(k_win, (d_mlp, d_model), jnp.float32) / jnp.sqrt(
        jnp.float32(d_model))
    w_out = jax.random.normal(k_wout, (d_model, d_mlp), jnp.float32) / jnp.sqrt(
        jnp.float32(d_model))
    b_in = 0.1 * jax.random.normal(k_bin, (d_mlp,), jnp.float32)
    b_out = 0.1 * jax.random.normal(k_bout, (d_model,), jnp.float32)

    out = mlp_forward(x, w_in, b_in, w_out, b_out, act_type,
                      cast_to_bf16=cast_to_bf16)
    out = jax.block_until_ready(out)
    ref = mlp_reference(x, w_in, b_in, w_out, b_out, act_type)
    assert out.shape == ref.shape
    err = float(jnp.max(jnp.abs(out - ref)))
    assert jnp.allclose(out, ref, atol=tol, rtol=tol), (
        f"mismatch act={act_type} bf16={cast_to_bf16} "
        f"shape=({batch},{pos},{d_model},{d_mlp}) max_err={err}")


if __name__ == "__main__":
    key = jax.random.PRNGKey(0)
    keys = jax.random.split(key, 5)

    # Base small shape, both activations, f32 path.
    _run_case(keys[0], 2, 8, 32, 128, "ReLU", False, 2e-2)
    _run_case(keys[1], 2, 8, 32, 128, "GeLU", False, 2e-2)
    # Padding path: n=18 -> padded rows, d_mlp=200 -> padded to 256.
    _run_case(keys[2], 2, 9, 64, 200, "GeLU", False, 2e-2)
    # Multi-step contraction path: d_mlp=640 -> tm=128, 5 accumulation steps.
    _run_case(keys[3], 1, 16, 32, 640, "ReLU", False, 2e-2)
    # bf16 weight/activation streaming path (looser tolerance).
    _run_case(keys[4], 2, 8, 32, 128, "GeLU", True, 1e-1)

    print("KERNEL_OK")
</pallas_src>

<mosaic_0001>
module attributes {stable_mosaic.version = 11 : i64} {
  func.func @mlp_kernel(%arg0: i32, %arg1: i32, %arg2: memref<16x32xf32, #tpu.memory_space<vmem>>, %arg3: memref<32x128xf32, #tpu.memory_space<vmem>>, %arg4: memref<1x128xf32, #tpu.memory_space<vmem>>, %arg5: memref<128x32xf32, #tpu.memory_space<vmem>>, %arg6: memref<1x32xf32, #tpu.memory_space<vmem>>, %arg7: memref<16x32xf32, #tpu.memory_space<vmem>>) attributes {dimension_semantics = [#tpu.dimension_semantics<parallel>, #tpu.dimension_semantics<arbitrary>], iteration_bounds = array<i64: 1, 1>, scalar_prefetch = 0 : i64, scratch_operands = 0 : i64, tpu.core_type = #tpu.core_type<tc>, window_params = [{transform_indices = @transform_0, window_bounds = array<i64: 16, 32>}, {transform_indices = @transform_1, window_bounds = array<i64: 32, 128>}, {transform_indices = @transform_2, window_bounds = array<i64: 1, 128>}, {transform_indices = @transform_3, window_bounds = array<i64: 128, 32>}, {pipeline_mode = #tpu.pipeline_mode<synchronous>, transform_indices = @transform_4, window_bounds = array<i64: 1, 32>}, {transform_indices = @transform_5, window_bounds = array<i64: 16, 32>}]} {
    %c0 = arith.constant 0 : index
    %c0_0 = arith.constant 0 : index
    %0 = vector.load %arg2[%c0, %c0_0] : memref<16x32xf32, #tpu.memory_space<vmem>>, vector<16x32xf32>
    %c0_1 = arith.constant 0 : index
    %c0_2 = arith.constant 0 : index
    %1 = vector.load %arg3[%c0_1, %c0_2] : memref<32x128xf32, #tpu.memory_space<vmem>>, vector<32x128xf32>
    %cst = arith.constant dense<0.000000e+00> : vector<16x128xf32>
    %2 = tpu.matmul %0, %1, %cst {dimension_numbers = #tpu.dot_dimension_numbers<[1], [0], [0], [1], [0, 0, 1, 1], [], []>} : vector<16x32xf32>, vector<32x128xf32>, vector<16x128xf32> -> vector<16x128xf32>
    %c0_3 = arith.constant 0 : index
    %c0_4 = arith.constant 0 : index
    %3 = vector.load %arg4[%c0_3, %c0_4] : memref<1x128xf32, #tpu.memory_space<vmem>>, vector<1x128xf32>
    %4 = vector.broadcast %3 : vector<1x128xf32> to vector<16x128xf32>
    %5 = arith.addf %2, %4 : vector<16x128xf32>
    %cst_5 = arith.constant 0.000000e+00 : f32
    %6 = vector.broadcast %cst_5 : f32 to vector<16x128xf32>
    %7 = arith.maximumf %5, %6 : vector<16x128xf32>
    %c0_6 = arith.constant 0 : index
    %c0_7 = arith.constant 0 : index
    %8 = vector.load %arg5[%c0_6, %c0_7] : memref<128x32xf32, #tpu.memory_space<vmem>>, vector<128x32xf32>
    %cst_8 = arith.constant dense<0.000000e+00> : vector<16x32xf32>
    %9 = tpu.matmul %7, %8, %cst_8 {dimension_numbers = #tpu.dot_dimension_numbers<[1], [0], [0], [1], [0, 0, 1, 1], [], []>} : vector<16x128xf32>, vector<128x32xf32>, vector<16x32xf32> -> vector<16x32xf32>
    %c0_i32 = arith.constant 0 : i32
    %10 = arith.cmpi eq, %arg1, %c0_i32 : i32
    %11 = arith.extui %10 : i1 to i32
    %c0_i32_9 = arith.constant 0 : i32
    %12 = arith.cmpi ne, %11, %c0_i32_9 : i32
    scf.if %12 {
      %c0_12 = arith.constant 0 : index
      %c0_13 = arith.constant 0 : index
      %16 = vector.load %arg6[%c0_12, %c0_13] : memref<1x32xf32, #tpu.memory_space<vmem>>, vector<1x32xf32>
      %17 = vector.broadcast %16 : vector<1x32xf32> to vector<16x32xf32>
      %18 = arith.addf %9, %17 : vector<16x32xf32>
      %c0_14 = arith.constant 0 : index
      %c0_15 = arith.constant 0 : index
      %19 = vector.load %arg7[%c0_14, %c0_15] : memref<16x32xf32, #tpu.memory_space<vmem>>, vector<16x32xf32>
      tpu.vector_store %arg7[%c0_14, %c0_15], %18 {strides = array<i32>} : memref<16x32xf32, #tpu.memory_space<vmem>>, vector<16x32xf32>,
    } else {
    }
    %c0_i32_10 = arith.constant 0 : i32
    %13 = arith.cmpi ne, %arg1, %c0_i32_10 : i32
    %14 = arith.extui %13 : i1 to i32
    %c0_i32_11 = arith.constant 0 : i32
    %15 = arith.cmpi ne, %14, %c0_i32_11 : i32
    scf.if %15 {
      %c0_12 = arith.constant 0 : index
      %c0_13 = arith.constant 0 : index
      %16 = vector.load %arg7[%c0_12, %c0_13] : memref<16x32xf32, #tpu.memory_space<vmem>>, vector<16x32xf32>
      %17 = arith.addf %16, %9 : vector<16x32xf32>
      %c0_14 = arith.constant 0 : index
      %c0_15 = arith.constant 0 : index
      %18 = vector.load %arg7[%c0_14, %c0_15] : memref<16x32xf32, #tpu.memory_space<vmem>>, vector<16x32xf32>
      tpu.vector_store %arg7[%c0_14, %c0_15], %17 {strides = array<i32>} : memref<16x32xf32, #tpu.memory_space<vmem>>, vector<16x32xf32>,
    } else {
    }
    return
  }
  func.func @transform_0(%arg0: i32, %arg1: i32) -> (i32, i32) {
    %c0_i32 = arith.constant 0 : i32
    %c0_i32_0 = arith.constant 0 : i32
    return %arg0, %c0_i32 : i32, i32
  }
  func.func @transform_1(%arg0: i32, %arg1: i32) -> (i32, i32) {
    %c0_i32 = arith.constant 0 : i32
    %c0_i32_0 = arith.constant 0 : i32
    return %c0_i32, %arg1 : i32, i32
  }
  func.func @transform_2(%arg0: i32, %arg1: i32) -> (i32, i32) {
    %c0_i32 = arith.constant 0 : i32
    %c0_i32_0 = arith.constant 0 : i32
    return %c0_i32, %arg1 : i32, i32
  }
  func.func @transform_3(%arg0: i32, %arg1: i32) -> (i32, i32) {
    %c0_i32 = arith.constant 0 : i32
    %c0_i32_0 = arith.constant 0 : i32
    return %arg1, %c0_i32 : i32, i32
  }
  func.func @transform_4(%arg0: i32, %arg1: i32) -> (i32, i32) {
    %c0_i32 = arith.constant 0 : i32
    %c0_i32_0 = arith.constant 0 : i32
    %c0_i32_1 = arith.constant 0 : i32
    return %c0_i32, %c0_i32_0 : i32, i32
  }
  func.func @transform_5(%arg0: i32, %arg1: i32) -> (i32, i32) {
    %c0_i32 = arith.constant 0 : i32
    %c0_i32_0 = arith.constant 0 : i32
    return %arg0, %c0_i32 : i32, i32
  }
}

</mosaic_0001>

<llo_original>
// kernel: tpu_custom_call.1
$region0: #{tpu_custom_call.1}
  #allocation0 [shape = 'u32[]', space=smem, size = 0x4, offset = 0x4, fixed_abs, tag = 'smem constant byte address 0x4 - core index']
  #allocation1 [shape = 'u32[144,128]{1,0:T(1,128)}', space=vmem, size = 0x12000, scoped, tag = 'internal scratch']
  %s0 = inlined_call_operand.vmem [shape: f32[16,32], index: 0, kind: input, shape index: {}]
  %s1 = inlined_call_operand.vmem [shape: f32[32,128], index: 1, kind: input, shape index: {}]
  %s2 = inlined_call_operand.vmem [shape: f32[1,128], index: 2, kind: input, shape index: {}]
  %s3 = inlined_call_operand.vmem [shape: f32[128,32], index: 3, kind: input, shape index: {}]
  %s4 = inlined_call_operand.vmem [shape: f32[1,32], index: 4, kind: input, shape index: {}]
  %s5 = inlined_call_operand.hbm [shape: f32[16,32], index: 5, kind: output, shape index: {}]
  %s6 = sld [smem:[#allocation0]]
  $region38: #{tpu_custom_call.1} parent=0
    _
  %s8 = ssub.s32 1, %s6
  %s9 = scalar_select 0, %s8, %s6
  $region1: #{tpu_custom_call.1} parent=0
    #allocation2 [shape = 'u8[8192]{0}', space=vmem, size = 0x2000, scoped, tag = 'output window, operand 0, single buffered']
    #allocation3 [shape = 's32[1]{0}', space=sflag, size = 0x4, scoped, tag = 'scoped memory for tpu_custom_call.1']
    %10 = vsyncpa [#allocation3], 0
    // Predicated region
    $region2: #{tpu_custom_call.1} parent=1 // pred_check
      _
    $region3: #{tpu_custom_call.1} parent=1 // pred_check_branch
      %12 = sbr.rel (0) target = $region5
    $region4: #{tpu_custom_call.1} parent=1 // pred_region
      _
    $region5: #{tpu_custom_call.1} parent=1 // pred_fallthru
      _
    // Predicated region
    $region6: #{tpu_custom_call.1} parent=1 // pred_check
      _
    $region7: #{tpu_custom_call.1} parent=1 // pred_check_branch
      %14 = sbr.rel (0) target = $region9
    $region8: #{tpu_custom_call.1} parent=1 // pred_region
      _
    $region9: #{tpu_custom_call.1} parent=1 // pred_fallthru
      _
    // Predicated region
    $region10: #{tpu_custom_call.1} parent=1 // pred_check
      _
    $region11: #{tpu_custom_call.1} parent=1 // pred_check_branch
      %16 = sbr.rel (0) target = $region13
    $region12: #{tpu_custom_call.1} parent=1 // pred_region
      _
    $region13: #{tpu_custom_call.1} parent=1 // pred_fallthru
      _
    // Predicated region
    $region14: #{tpu_custom_call.1} parent=1 // pred_check
      _
    $region15: #{tpu_custom_call.1} parent=1 // pred_check_branch
      %18 = sbr.rel (0) target = $region17
    $region16: #{tpu_custom_call.1} parent=1 // pred_region
      _
    $region17: #{tpu_custom_call.1} parent=1 // pred_fallthru
      _
    // Predicated region
    $region18: #{tpu_custom_call.1} parent=1 // pred_check
      _
    $region19: #{tpu_custom_call.1} parent=1 // pred_check_branch
      %20 = sbr.rel (0) target = $region21
    $region20: #{tpu_custom_call.1} parent=1 // pred_region
      _
    $region21: #{tpu_custom_call.1} parent=1 // pred_fallthru
      _
    %v21 = vld [vmem:[%s0] sm:$0xff]
    %v22 = vld [vmem:[%s0 + $0x8] sm:$0xff]
    %v23 = vld [vmem:[%s1] sm:$0xff]
    %v24 = vld [vmem:[%s1 + $0x8] sm:$0xff]
    %v25 = vld [vmem:[%s1 + $0x10] sm:$0xff]
    %v26 = vld [vmem:[%s1 + $0x18] sm:$0xff]
    %v27 = vld [vmem:[%s2] sm:$0x1]
    %v29 = vlaneseq
    %v30 = vshrl.u32 %v29, 7
    %v31 = vsub.s32 0, %v30
    %v32 = vrot.slane %v27, %v31
    %vm34 = vcmask 261120
    %v36 = vsel %vm34, %v21, 0
    %v39 = vsel %vm34, %v22, 0
    %41 = vmatprep.subr.mxu0 0.0
    %42 = vmatpush1.msra.mxu0 %v23
    %43 = vmatprep.subr.mxu0 0.0
    %44 = vmatpush1.msra.mxu0 %v24
    %45 = vmatprep.subr.mxu0 0.0
    %46 = vmatpush1.msra.mxu0 %v25
    %47 = vmatprep.subr.mxu0 0.0
    %48 = vmatpush1.msra.mxu0 %v26
    %49 = vmatprep.subr.mxu0 0.0
    %50 = vmatpush1.msra.mxu0 0.0
    %51 = vmatprep.subr.mxu0 0.0
    %52 = vmatpush1.msra.mxu0 0.0
    %53 = vmatprep.subr.mxu0 0.0
    %54 = vmatpush1.msra.mxu0 0.0
    %55 = vmatprep.subr.mxu0 0.0
    %56 = vmatpush1.msra.mxu0 0.0
    %57 = vmatprep.subr.mxu0 0.0
    %58 = vmatpush1.msra.mxu0 0.0
    %59 = vmatprep.subr.mxu0 0.0
    %60 = vmatpush1.msra.mxu0 0.0
    %61 = vmatprep.subr.mxu0 0.0
    %62 = vmatpush1.msra.mxu0 0.0
    %63 = vmatprep.subr.mxu0 0.0
    %64 = vmatpush1.msra.mxu0 0.0
    %65 = vmatprep.subr.mxu0 0.0
    %66 = vmatpush1.msra.mxu0 0.0
    %67 = vmatprep.subr.mxu0 0.0
    %68 = vmatpush1.msra.mxu0 0.0
    %69 = vmatprep.subr.mxu0 0.0
    %70 = vmatpush1.msra.mxu0 0.0
    %71 = vmatprep.subr.mxu0 0.0
    %72 = vmatpush1.msra.mxu0 0.0
    %73 = vmatprep.subr.mxu0 0.0
    %74 = vmatpush1.msra.mxu0 0.0
    %75 = vmatprep.subr.mxu0 0.0
    %76 = vmatpush1.msra.mxu0 0.0
    %77 = vmatprep.subr.mxu0 0.0
    %78 = vmatpush1.msra.mxu0 0.0
    %79 = vmatprep.subr.mxu0 0.0
    %80 = vmatpush1.msra.mxu0 0.0
    %81 = vmatprep.subr.mxu0 0.0
    %82 = vmatpush1.msra.mxu0 0.0
    %83 = vmatprep.subr.mxu0 0.0
    %84 = vmatpush1.msra.mxu0 0.0
    %85 = vmatprep.subr.mxu0 0.0
    %86 = vmatpush1.msra.mxu0 0.0
    %87 = vmatprep.subr.mxu0 0.0
    %88 = vmatpush1.msra.mxu0 0.0
    %89 = vmatprep.subr.mxu0 0.0
    %90 = vmatpush1.msra.mxu0 0.0
    %91 = vmatprep.subr.mxu0 0.0
    %92 = vmatpush1.msra.mxu0 0.0
    %93 = vmatprep.subr.mxu0 0.0
    %94 = vmatpush1.msra.mxu0 0.0
    %95 = vmatprep.subr.mxu0 0.0
    %96 = vmatpush1.msra.mxu0 0.0
    %97 = vmatprep.subr.mxu0 0.0
    %98 = vmatpush1.msra.mxu0 0.0
    %99 = vmatprep.subr.mxu0 0.0
    %100 = vmatpush1.msra.mxu0 0.0
    %101 = vmatprep.subr.mxu0 0.0
    %102 = vmatpush1.msra.mxu0 0.0
    %103 = vmatprep.subr.mxu0 0.0
    %104 = vmatpush1.msra.mxu0 0.0
    %105 = vmatprep.mubr.f32.mxu0 0.0
    %106 = vmatmul.mubr.f32.gmra.mrb[0].mxu0 %v36
    %v107 = vpop.f32.mrb[0].mxu0
    %v108 = vadd.f32 %v32, %v107
    %v109 = vpop.f32.mrb[0].mxu0
    %110 = vmatprep.mubr.f32.mxu0 0.0
    %111 = vmatmul.mubr.f32.gmra.mrb[0].mxu0 %v39
    %v112 = vpop.f32.mrb[0].mxu0
    %v113 = vadd.f32 %v32, %v112
    %v114 = vpop.f32.mrb[0].mxu0
    %115 = vdwg.mxu0
    %v116 = vmax.f32 %v108, 0.0
    %v117 = vmax.f32 %v113, 0.0
    %v118 = vld [vmem:[%s3] sm:$0xff]
    %v119 = vld [vmem:[%s3 + $0x8] sm:$0xff]
    %v120 = vld [vmem:[%s3 + $0x10] sm:$0xff]
    %v121 = vld [vmem:[%s3 + $0x18] sm:$0xff]
    %v122 = vld [vmem:[%s3 + $0x20] sm:$0xff]
    %v123 = vld [vmem:[%s3 + $0x28] sm:$0xff]
    %v124 = vld [vmem:[%s3 + $0x30] sm:$0xff]
    %v125 = vld [vmem:[%s3 + $0x38] sm:$0xff]
    %v126 = vld [vmem:[%s3 + $0x40] sm:$0xff]
    %v127 = vld [vmem:[%s3 + $0x48] sm:$0xff]
    %v128 = vld [vmem:[%s3 + $0x50] sm:$0xff]
    %v129 = vld [vmem:[%s3 + $0x58] sm:$0xff]
    %v130 = vld [vmem:[%s3 + $0x60] sm:$0xff]
    %v131 = vld [vmem:[%s3 + $0x68] sm:$0xff]
    %v132 = vld [vmem:[%s3 + $0x70] sm:$0xff]
    %v133 = vld [vmem:[%s3 + $0x78] sm:$0xff]
    %134 = vmatprep.subr.mxu0 0.0
    %135 = vmatpush1.msra.mxu0 %v118
    %136 = vmatprep.subr.mxu0 0.0
    %137 = vmatpush1.msra.mxu0 %v119
    %138 = vmatprep.subr.mxu0 0.0
    %139 = vmatpush1.msra.mxu0 %v120
    %140 = vmatprep.subr.mxu0 0.0
    %141 = vmatpush1.msra.mxu0 %v121
    %142 = vmatprep.subr.mxu0 0.0
    %143 = vmatpush1.msra.mxu0 %v122
    %144 = vmatprep.subr.mxu0 0.0
    %145 = vmatpush1.msra.mxu0 %v123
    %146 = vmatprep.subr.mxu0 0.0
    %147 = vmatpush1.msra.mxu0 %v124
    %148 = vmatprep.subr.mxu0 0.0
    %149 = vmatpush1.msra.mxu0 %v125
    %150 = vmatprep.subr.mxu0 0.0
    %151 = vmatpush1.msra.mxu0 %v126
    %152 = vmatprep.subr.mxu0 0.0
    %153 = vmatpush1.msra.mxu0 %v127
    %154 = vmatprep.subr.mxu0 0.0
    %155 = vmatpush1.msra.mxu0 %v128
    %156 = vmatprep.subr.mxu0 0.0
    %157 = vmatpush1.msra.mxu0 %v129
    %158 = vmatprep.subr.mxu0 0.0
    %159 = vmatpush1.msra.mxu0 %v130
    %160 = vmatprep.subr.mxu0 0.0
    %161 = vmatpush1.msra.mxu0 %v131
    %162 = vmatprep.subr.mxu0 0.0
    %163 = vmatpush1.msra.mxu0 %v132
    %164 = vmatprep.subr.mxu0 0.0
    %165 = vmatpush1.msra.mxu0 %v133
    %166 = vmatprep.subr.mxu0 0.0
    %167 = vmatpush1.msra.mxu0 0.0
    %168 = vmatprep.subr.mxu0 0.0
    %169 = vmatpush1.msra.mxu0 0.0
    %170 = vmatprep.subr.mxu0 0.0
    %171 = vmatpush1.msra.mxu0 0.0
    %172 = vmatprep.subr.mxu0 0.0
    %173 = vmatpush1.msra.mxu0 0.0
    %174 = vmatprep.subr.mxu0 0.0
    %175 = vmatpush1.msra.mxu0 0.0
    %176 = vmatprep.subr.mxu0 0.0
    %177 = vmatpush1.msra.mxu0 0.0
    %178 = vmatprep.subr.mxu0 0.0
    %179 = vmatpush1.msra.mxu0 0.0
    %180 = vmatprep.subr.mxu0 0.0
    %181 = vmatpush1.msra.mxu0 0.0
    %182 = vmatprep.subr.mxu0 0.0
    %183 = vmatpush1.msra.mxu0 0.0
    %184 = vmatprep.subr.mxu0 0.0
    %185 = vmatpush1.msra.mxu0 0.0
    %186 = vmatprep.subr.mxu0 0.0
    %187 = vmatpush1.msra.mxu0 0.0
    %188 = vmatprep.subr.mxu0 0.0
    %189 = vmatpush1.msra.mxu0 0.0
    %190 = vmatprep.subr.mxu0 0.0
    %191 = vmatpush1.msra.mxu0 0.0
    %192 = vmatprep.subr.mxu0 0.0
    %193 = vmatpush1.msra.mxu0 0.0
    %194 = vmatprep.subr.mxu0 0.0
    %195 = vmatpush1.msra.mxu0 0.0
    %196 = vmatprep.subr.mxu0 0.0
    %197 = vmatpush1.msra.mxu0 0.0
    %198 = vmatprep.mubr.f32.mxu0 0.0
    %199 = vmatmul.mubr.f32.gmra.mrb[0].mxu0 %v116
    %v200 = vpop.f32.mrb[0].mxu0
    %v201 = vadd.f32 0.0, %v200
    %v202 = vpop.f32.mrb[0].mxu0
    %203 = vmatprep.mubr.f32.mxu0 0.0
    %204 = vmatmul.mubr.f32.gmra.mrb[0].mxu0 %v117
    %v205 = vpop.f32.mrb[0].mxu0
    %v206 = vadd.f32 0.0, %v205
    %v207 = vpop.f32.mrb[0].mxu0
    %208 = vdwg.mxu0
    %p209 = scmp.eq.s32.totalorder 0, 0
    // Predicated region
    $region22: #{tpu_custom_call.1} parent=1 // pred_check
      %p210 = pneg %p209
    $region23: #{tpu_custom_call.1} parent=1 // pred_check_branch
      %212 = sbr.rel (%p210) target = $region25
    $region24: #{tpu_custom_call.1} parent=1 // pred_region
      %v213 = vld [vmem:[%s4] sm:$0x1]
      %v215 = vlaneseq
      %v216 = vshrl.u32 %v215, 7
      %v217 = vsub.s32 0, %v216
      %v218 = vrot.slane %v213, %v217
      %v220 = vadd.f32 %v201, %v218
      %v221 = vadd.f32 %v206, %v218
      %222 = vst.msk [vmem:[#allocation2] sm:$0xff] %vm34, %v220
      %223 = vst.msk [vmem:[#allocation2 + $0x8] sm:$0xff] %vm34, %v221
    $region25: #{tpu_custom_call.1} parent=1 // pred_fallthru
      _
    %p224 = scmp.ne.s32.totalorder 0, 0
    // Predicated region
    $region26: #{tpu_custom_call.1} parent=1 // pred_check
      %p225 = pneg %p224
    $region27: #{tpu_custom_call.1} parent=1 // pred_check_branch
      %227 = sbr.rel (%p225) target = $region29
    $region28: #{tpu_custom_call.1} parent=1 // pred_region
      %v228 = vld [vmem:[#allocation2] sm:$0xff]
      %v229 = vld [vmem:[#allocation2 + $0x8] sm:$0xff]
      %v230 = vadd.f32 %v228, %v201
      %v231 = vadd.f32 %v229, %v206
      %232 = vst.msk [vmem:[#allocation2] sm:$0xff] %vm34, %v230
      %233 = vst.msk [vmem:[#allocation2 + $0x8] sm:$0xff] %vm34, %v231
    $region29: #{tpu_custom_call.1} parent=1 // pred_fallthru
      _
    // Predicated region
    $region30: #{tpu_custom_call.1} parent=1 // pred_check
      _
    $region31: #{tpu_custom_call.1} parent=1 // pred_check_branch
      %235 = sbr.rel (0) target = $region33
    $region32: #{tpu_custom_call.1} parent=1 // pred_region
      %s237 = ssub.s32 256, 256
      %238 = vsyncadd [#allocation3], %s237
      %s239 = sshll.u32 [#allocation2], 4
      %s240 = int_to_ptr.vmem [resolvable:$true] %s239
      %245 = dma.vmem_to_hbm [thread:$0]  %s240, 256, %s5, [#allocation3], 128, 128, 8
    $region33: #{tpu_custom_call.1} parent=1 // pred_fallthru
      _
    // Predicated region
    $region34: #{tpu_custom_call.1} parent=1 // pred_check
      _
    $region35: #{tpu_custom_call.1} parent=1 // pred_check_branch
      %247 = sbr.rel (0) target = $region37
    $region36: #{tpu_custom_call.1} parent=1 // pred_region
      %248 = dma.done [#allocation3], 256
    $region37: #{tpu_custom_call.1} parent=1 // pred_fallthru
      _
    %249 = vsyncpa [#allocation3], 1

</llo_original>
